<compile_context>
chip_gen: v5e
topology: v5e:2x2
jax: 0.10.0
libtpu: 0.0.40
codegen_flags: <defaults>
</compile_context>

<pallas_src>
import math
import functools

import jax
import jax.numpy as jnp
from jax.experimental import pallas as pl
from jax.experimental.pallas import tpu as pltpu


# ----------------------------------------------------------------------------
# Kernels (x/out blocks are 2-D [tile_s, B*D]; pe block is [tile_s, 1, D])
# ----------------------------------------------------------------------------
def _pe_add_kernel(x_ref, pe_ref, o_ref, *, B):
    """Eval-mode forward: out = x + pe (dropout is identity in eval)."""
    ts = x_ref.shape[0]
    D = pe_ref.shape[-1]
    pe = pe_ref[...].reshape(ts, D).astype(o_ref.dtype)     # [ts, D]
    pe = jnp.tile(pe, (1, B))                                # [ts, B*D]
    o_ref[...] = (x_ref[...].astype(o_ref.dtype) + pe).astype(o_ref.dtype)


def _hash32(x):
    """lowbias32 integer mixer — portable counter-based PRNG (uint32 in/out)."""
    x = (x ^ (x >> 16)) * jnp.uint32(0x7FEB352D)
    x = (x ^ (x >> 15)) * jnp.uint32(0x846CA68B)
    x = x ^ (x >> 16)
    return x


def _pe_add_dropout_kernel(seed_ref, x_ref, pe_ref, o_ref, *, B, threshold, scale):
    """Training-mode forward: out = dropout(x + pe, p) with 1/(1-p) scaling."""
    ts, BD = x_ref.shape
    D = pe_ref.shape[-1]
    pe = jnp.tile(pe_ref[...].reshape(ts, D).astype(o_ref.dtype), (1, B))
    y = x_ref[...].astype(o_ref.dtype) + pe

    # Counter-based PRNG on the *global* element index, mixed with the seed via
    # a golden-ratio stride so consecutive seeds give unrelated streams.
    # Pure VPU int ops (free filler under the DMA); also lowers in interpret
    # mode, unlike pltpu.prng_* which has no CPU rule.
    row = jax.lax.broadcasted_iota(jnp.int32, (ts, BD), 0).astype(jnp.uint32)
    col = jax.lax.broadcasted_iota(jnp.int32, (ts, BD), 1).astype(jnp.uint32)
    base = (pl.program_id(0) * ts).astype(jnp.uint32)
    idx = (base + row) * jnp.uint32(BD) + col
    seed_stream = seed_ref[0].astype(jnp.uint32) * jnp.uint32(0x9E3779B9)
    bits = _hash32(idx ^ seed_stream)
    # keep iff bits >= round(p * 2^32)  =>  P(keep) = 1 - p  (pure int compare)
    keep = bits >= jnp.uint32(threshold)
    o_ref[...] = jnp.where(
        keep, y * jnp.asarray(scale, dtype=y.dtype), jnp.zeros_like(y)
    ).astype(o_ref.dtype)


# ----------------------------------------------------------------------------
# Buffer construction — identical math to the PyTorch __init__
# ----------------------------------------------------------------------------
def make_pe_table(d_model, max_len=5000, dtype=jnp.float32):
    position = jnp.arange(max_len, dtype=jnp.float32)[:, None]            # [L, 1]
    div_term = jnp.exp(
        jnp.arange(0, d_model, 2, dtype=jnp.float32) * (-math.log(10000.0) / d_model)
    )                                                                      # [D/2]
    pe = jnp.zeros((max_len, d_model), dtype=jnp.float32)
    pe = pe.at[:, 0::2].set(jnp.sin(position * div_term))
    pe = pe.at[:, 1::2].set(jnp.cos(position * div_term))
    # unsqueeze(0).transpose(0, 1) -> [max_len, 1, d_model]
    return pe[:, None, :].astype(dtype)


# ----------------------------------------------------------------------------
# Tiling / VMEM heuristics
# ----------------------------------------------------------------------------
def _sublane_rows(dtype):
    # f32 -> 8, bf16/f16 -> 16, int8/fp8 -> 32
    return max(8, 32 // jnp.dtype(dtype).itemsize)


def _vmem_capacity_bytes():
    try:
        return int(pltpu.get_tpu_info().vmem_capacity_bytes)
    except Exception:
        return 64 * 1024 * 1024       # conservative (v7x per-TC) if undetectable


def _choose_tile_s(S, bytes_per_row, sublane, target_bytes):
    """Largest sublane-multiple tile <= target_bytes, with >= 2 grid steps."""
    if S <= sublane:
        return S                      # full-extent block is the only legal option
    rows_for_target = max(
        sublane, (target_bytes // max(1, bytes_per_row)) // sublane * sublane)
    # Never one giant block: >=2 steps gives v7x dual-TC sharding + pipelining.
    half_rows = max(sublane, (S // 2) // sublane * sublane)
    return min(rows_for_target, half_rows)


# ----------------------------------------------------------------------------
# Wrapper
# ----------------------------------------------------------------------------
def positional_encoding(x, pe_table, *, dropout_p=0.1, training=False, seed=0,
                        tile_s=None):
    """x: [S, B, D] -> [S, B, D].  pe_table: [max_len, 1, D]."""
    S, B, D = x.shape
    L, one, Dp = pe_table.shape
    assert one == 1 and Dp == D and L >= S
    # NOTE: best perf when D % 128 == 0 (lane-dense, unmasked stores).

    # Match PyTorch promotion: x + f32 pe promotes (bf16 x -> f32 out).
    out_dtype = jnp.result_type(x.dtype, pe_table.dtype)

    x_bytes = jnp.dtype(x.dtype).itemsize
    o_bytes = jnp.dtype(out_dtype).itemsize
    pe_bytes = jnp.dtype(pe_table.dtype).itemsize
    sublane = max(_sublane_rows(x.dtype), _sublane_rows(out_dtype))

    vmem_cap = _vmem_capacity_bytes()
    # ~16 MiB blocks on 128 MiB-VMEM parts (v5e/v6e), ~6 MiB on 64 MiB (v7x).
    target_block = (16 << 20) if vmem_cap >= (96 << 20) else (6 << 20)
    if tile_s is None:
        tile_s = _choose_tile_s(S, B * D * max(x_bytes, o_bytes), sublane,
                                target_block)
    grid = (pl.cdiv(S, tile_s),)      # ragged last block is fine (elementwise)

    # Lane/sublane-dense 2-D views; contiguous reshape is free.
    x2 = x.reshape(S, B * D)

    # `*_` absorbs scalar-prefetch refs in the training branch.
    x_spec = pl.BlockSpec((tile_s, B * D), lambda i, *_: (i, 0))
    pe_spec = pl.BlockSpec((tile_s, 1, D), lambda i, *_: (i, 0, 0))  # slice pe in-spec
    out_spec = pl.BlockSpec((tile_s, B * D), lambda i, *_: (i, 0))
    out_shape = jax.ShapeDtypeStruct((S, B * D), out_dtype)

    # VMEM budget: double-buffered x/out/pe blocks + headroom, capped per-gen.
    working = 2 * (tile_s * B * D * (x_bytes + o_bytes)
                   + tile_s * D * pe_bytes) + (2 << 20)
    vmem_limit = int(min(int(0.75 * vmem_cap), max(working, 32 << 20)))
    cparams = pltpu.CompilerParams(dimension_semantics=("parallel",),
                                   vmem_limit_bytes=vmem_limit)

    if (not training) or dropout_p == 0.0:
        out2 = pl.pallas_call(
            functools.partial(_pe_add_kernel, B=B),
            out_shape=out_shape,
            grid_spec=pltpu.PrefetchScalarGridSpec(
                num_scalar_prefetch=0,
                grid=grid,
                in_specs=[x_spec, pe_spec],
                out_specs=out_spec,
            ),
            compiler_params=cparams,
        )(x2, pe_table)
        return out2.reshape(S, B, D)

    assert 0.0 < dropout_p < 1.0, "dropout_p must be in (0, 1) when training"
    threshold = min(int(round(dropout_p * 4294967296.0)), 4294967295)
    scale = 1.0 / (1.0 - dropout_p)
    seed_arr = jnp.array([seed], dtype=jnp.int32)

    out2 = pl.pallas_call(
        functools.partial(_pe_add_dropout_kernel, B=B,
                          threshold=threshold, scale=scale),
        out_shape=out_shape,
        grid_spec=pltpu.PrefetchScalarGridSpec(
            num_scalar_prefetch=1,                    # seed lands in SMEM
            grid=grid,
            in_specs=[x_spec, pe_spec],
            out_specs=out_spec,
        ),
        compiler_params=cparams,
    )(seed_arr, x2, pe_table)
    return out2.reshape(S, B, D)


# ----------------------------------------------------------------------------
# Demo / self-check
# ----------------------------------------------------------------------------
if __name__ == "__main__":
    S, B, D = 16, 2, 128         # seq=16, batch=2, d_model=128 (lane-dense)
    max_len = 64                 # small synthetic max_len (>= S)
    dropout_p = 0.1

    key = jax.random.PRNGKey(0)
    x = jax.random.normal(key, (S, B, D), dtype=jnp.float32)

    pe_table = make_pe_table(D, max_len=max_len)

    # Eval-mode forward (dropout is identity), matches PyTorch module.eval()
    out = positional_encoding(x, pe_table, dropout_p=dropout_p, training=False)
    out = jax.block_until_ready(out)

    ref = x + pe_table[:S]
    assert out.shape == (S, B, D)
    assert jnp.allclose(out, ref, atol=1e-6), "mismatch vs reference"

    # Training-mode forward (in-kernel counter-hash dropout, 1/(1-p) scaling)
    out_train = positional_encoding(
        x, pe_table, dropout_p=dropout_p, training=True, seed=123)
    out_train = jax.block_until_ready(out_train)
    assert out_train.shape == (S, B, D)
    # Surviving elements must equal ref / (1-p); dropped ones are exactly 0.
    kept = out_train != 0
    assert jnp.allclose(jnp.where(kept, out_train, 0.0),
                        jnp.where(kept, ref / (1.0 - dropout_p), 0.0),
                        atol=1e-5)
    # Keep-rate sanity check (should be ~1-p).
    keep_rate = float(jnp.mean(kept.astype(jnp.float32)))
    assert 0.75 <= keep_rate <= 0.99, keep_rate

    print("KERNEL_OK")
</pallas_src>

<mosaic_0001>
module attributes {stable_mosaic.version = 11 : i64} {
  func.func @_pe_add_kernel(%arg0: i32, %arg1: memref<8x256xf32, #tpu.memory_space<vmem>>, %arg2: memref<8x1x128xf32, #tpu.memory_space<vmem>>, %arg3: memref<8x256xf32, #tpu.memory_space<vmem>>) attributes {dimension_semantics = [#tpu.dimension_semantics<parallel>], iteration_bounds = array<i64: 2>, scalar_prefetch = 0 : i64, scratch_operands = 0 : i64, tpu.core_type = #tpu.core_type<tc>, window_params = [{transform_indices = @transform_0, window_bounds = array<i64: 8, 256>}, {transform_indices = @transform_1, window_bounds = array<i64: 8, 1, 128>}, {transform_indices = @transform_2, window_bounds = array<i64: 8, 256>}]} {
    %c0 = arith.constant 0 : index
    %c0_0 = arith.constant 0 : index
    %c0_1 = arith.constant 0 : index
    %0 = vector.load %arg2[%c0, %c0_0, %c0_1] : memref<8x1x128xf32, #tpu.memory_space<vmem>>, vector<8x1x128xf32>
    %1 = vector.shape_cast %0 : vector<8x1x128xf32> to vector<8x128xf32>
    %2 = tpu.concatenate %1, %1 in 1 : vector<8x128xf32>, vector<8x128xf32> -> vector<8x256xf32>
    %c0_2 = arith.constant 0 : index
    %c0_3 = arith.constant 0 : index
    %3 = vector.load %arg1[%c0_2, %c0_3] : memref<8x256xf32, #tpu.memory_space<vmem>>, vector<8x256xf32>
    %4 = arith.addf %3, %2 : vector<8x256xf32>
    %c0_4 = arith.constant 0 : index
    %c0_5 = arith.constant 0 : index
    %5 = vector.load %arg3[%c0_4, %c0_5] : memref<8x256xf32, #tpu.memory_space<vmem>>, vector<8x256xf32>
    tpu.vector_store %arg3[%c0_4, %c0_5], %4 {strides = array<i32>} : memref<8x256xf32, #tpu.memory_space<vmem>>, vector<8x256xf32>,
    return
  }
  func.func @transform_0(%arg0: i32) -> (i32, i32) {
    %c0_i32 = arith.constant 0 : i32
    %c0_i32_0 = arith.constant 0 : i32
    return %arg0, %c0_i32 : i32, i32
  }
  func.func @transform_1(%arg0: i32) -> (i32, i32, i32) {
    %c0_i32 = arith.constant 0 : i32
    %c0_i32_0 = arith.constant 0 : i32
    %c0_i32_1 = arith.constant 0 : i32
    return %arg0, %c0_i32, %c0_i32_0 : i32, i32, i32
  }
  func.func @transform_2(%arg0: i32) -> (i32, i32) {
    %c0_i32 = arith.constant 0 : i32
    %c0_i32_0 = arith.constant 0 : i32
    return %arg0, %c0_i32 : i32, i32
  }
}

</mosaic_0001>

<llo_original>
// kernel: tpu_custom_call.1
$region0: #{tpu_custom_call.1}
  #allocation0 [shape = 'u32[]', space=smem, size = 0x4, offset = 0x4, fixed_abs, tag = 'smem constant byte address 0x4 - core index']
  #allocation1 [shape = 'u32[72,128]{1,0:T(1,128)}', space=vmem, size = 0x9000, scoped, tag = 'internal scratch']
  %s0 = inlined_call_operand.hbm [shape: f32[16,256], index: 0, kind: input, shape index: {}]
  %s1 = inlined_call_operand.hbm [shape: f32[64,1,128], index: 1, kind: input, shape index: {}]
  %s2 = inlined_call_operand.hbm [shape: f32[16,256], index: 2, kind: output, shape index: {}]
  %s3 = sld [smem:[#allocation0]]
  $region49: #{tpu_custom_call.1} parent=0
    _
  %s5 = ssub.s32 1, %s3
  %s6 = scalar_select 0, %s5, %s3
  $region1: #{tpu_custom_call.1} parent=0
    #allocation2 [shape = 'u8[16384]{0}', space=vmem, size = 0x4000, scoped, tag = 'input window, operand 0']
    #allocation3 [shape = 's32[2]{0}', space=sflag, size = 0x8, scoped, tag = 'scoped memory for tpu_custom_call.1']
    #allocation4 [shape = 's32[2]{0}', space=sflag, size = 0x8, scoped, tag = 'scoped memory for tpu_custom_call.1']
    #allocation5 [shape = 'u8[8192]{0}', space=vmem, size = 0x2000, scoped, tag = 'input window, operand 1']
    #allocation6 [shape = 's32[2]{0}', space=sflag, size = 0x8, scoped, tag = 'scoped memory for tpu_custom_call.1']
    #allocation7 [shape = 'u8[16384]{0}', space=vmem, size = 0x4000, scoped, tag = 'output window, operand 0']
    %7 = vsyncpa [#allocation3], 0
    %s8 = scalar_lea.sflag [#allocation3], 1
    %9 = vsyncpa %s8, 0
    %10 = vsyncpa [#allocation6], 0
    %s11 = scalar_lea.sflag [#allocation6], 1
    %12 = vsyncpa %s11, 0
    %13 = vsyncpa [#allocation4], 0
    %s14 = scalar_lea.sflag [#allocation4], 1
    %15 = vsyncpa %s14, 0
    loop: start=0, step=1, limit=4
    $region2: #{tpu_custom_call.1} parent=1 // loop_pre_header
      _
    $region3: #{tpu_custom_call.1} parent=1 // loop_header
      %s17 = sphi 0, %s21
      %p18 = scmp.ge.s32.totalorder %s17, 4
      %s27 = sphi 0, %s29
      %s30 = sphi 0, %s27
      %s31 = sphi 0, %s30
      %s47 = sphi 0, %s31
      %s53 = sphi 0, %s55
      %s56 = sphi 0, %s53
      %s57 = sphi 0, %s56
      %s73 = sphi 0, %s57
      %s79 = sphi 0, %s81
      %s82 = sphi 0, %s79
      %s83 = sphi 0, %s82
      %s99 = sphi 0, %s83
    $region4: #{tpu_custom_call.1} parent=1 // loop_header_branch
      %20 = sbr.rel (%p18) target = $region8
    $region5: #{tpu_custom_call.1} parent=1 // loop_body
      %s22 = ssub.s32 %s17, 1
      %s23 = ssub.s32 %s17, 2
      %s24 = sadd.s32 %s17, 1
      %s25 = ssub.s32 %s17, %s24
      %p26 = scmp.eq.s32.totalorder %s25, 0
      %s28 = sadd.s32 %s27, 1
      %s29 = scalar_select %p26, %s27, %s28
      %p32 = pneg %p26
      %p33 = scmp.eq.s32.totalorder %s17, 1
      %p34 = por %p32, %p33
      %p35 = scmp.ne.s32.totalorder %s27, %s30
      %p36 = scmp.eq.s32.totalorder %s17, 0
      %p37 = por %p35, %p36
      %p38 = scmp.ne.s32.totalorder %s27, %s30
      %p39 = scmp.eq.s32.totalorder %s22, 1
      %p40 = por %p38, %p39
      %p41 = scmp.ne.s32.totalorder %s30, %s31
      %p42 = scmp.eq.s32.totalorder %s22, 0
      %p43 = por %p41, %p42
      %p44 = scmp.ne.s32.totalorder %s30, %s31
      %p45 = scmp.eq.s32.totalorder %s23, 1
      %p46 = por %p44, %p45
      %p48 = scmp.ne.s32.totalorder %s31, %s47
      %p49 = scmp.eq.s32.totalorder %s23, 0
      %p50 = por %p48, %p49
      %s51 = ssub.s32 %s17, %s24
      %p52 = scmp.eq.s32.totalorder %s51, 0
      %s54 = sadd.s32 %s53, 1
      %s55 = scalar_select %p52, %s53, %s54
      %p58 = pneg %p52
      %p59 = scmp.eq.s32.totalorder %s17, 1
      %p60 = por %p58, %p59
      %p61 = scmp.ne.s32.totalorder %s53, %s56
      %p62 = scmp.eq.s32.totalorder %s17, 0
      %p63 = por %p61, %p62
      %p64 = scmp.ne.s32.totalorder %s53, %s56
      %p65 = scmp.eq.s32.totalorder %s22, 1
      %p66 = por %p64, %p65
      %p67 = scmp.ne.s32.totalorder %s56, %s57
      %p68 = scmp.eq.s32.totalorder %s22, 0
      %p69 = por %p67, %p68
      %p70 = scmp.ne.s32.totalorder %s56, %s57
      %p71 = scmp.eq.s32.totalorder %s23, 1
      %p72 = por %p70, %p71
      %p74 = scmp.ne.s32.totalorder %s57, %s73
      %p75 = scmp.eq.s32.totalorder %s23, 0
      %p76 = por %p74, %p75
      %s77 = ssub.s32 %s17, %s24
      %p78 = scmp.eq.s32.totalorder %s77, 0
      %s80 = sadd.s32 %s79, 1
      %s81 = scalar_select %p78, %s79, %s80
      %p84 = pneg %p78
      %p85 = scmp.eq.s32.totalorder %s17, 1
      %p86 = por %p84, %p85
      %p87 = scmp.ne.s32.totalorder %s79, %s82
      %p88 = scmp.eq.s32.totalorder %s17, 0
      %p89 = por %p87, %p88
      %p90 = scmp.ne.s32.totalorder %s79, %s82
      %p91 = scmp.eq.s32.totalorder %s22, 1
      %p92 = por %p90, %p91
      %p93 = scmp.ne.s32.totalorder %s82, %s83
      %p94 = scmp.eq.s32.totalorder %s22, 0
      %p95 = por %p93, %p94
      %p96 = scmp.ne.s32.totalorder %s82, %s83
      %p97 = scmp.eq.s32.totalorder %s23, 1
      %p98 = por %p96, %p97
      %p100 = scmp.ne.s32.totalorder %s83, %s99
      %p101 = scmp.eq.s32.totalorder %s23, 0
      %p102 = por %p100, %p101
      %p103 = scmp.le.s32.totalorder 1, %s17
      %p104 = scmp.lt.s32.totalorder %s17, 3
      %p105 = pnand %p103, %p104
      %p106 = pneg %p105
      // Predicated region
      $region9: #{tpu_custom_call.1} parent=5 // pred_check
        _
      $region10: #{tpu_custom_call.1} parent=5 // pred_check_branch
        %108 = sbr.rel (%p105) target = $region12
      $region11: #{tpu_custom_call.1} parent=5 // pred_region
        %s109 = ssub.s32 %s17, 1
      $region12: #{tpu_custom_call.1} parent=5 // pred_fallthru
        _
      %p110 = scmp.lt.s32.totalorder %s17, 2
      // Predicated region
      $region13: #{tpu_custom_call.1} parent=5 // pred_check
        %p111 = pneg %p110
      $region14: #{tpu_custom_call.1} parent=5 // pred_check_branch
        %113 = sbr.rel (%p111) target = $region16
      $region15: #{tpu_custom_call.1} parent=5 // pred_region
        // Predicated region
        $region17: #{tpu_custom_call.1} parent=15 // pred_check
          %p114 = pneg %p37
        $region18: #{tpu_custom_call.1} parent=15 // pred_check_branch
          %116 = sbr.rel (%p114) target = $region20
        $region19: #{tpu_custom_call.1} parent=15 // pred_region
          %s117 = sand.u32 %s27, 1
          %s118 = scalar_lea.sflag [#allocation3], %s117
          %s119 = sand.u32 %s27, 1
          %s120 = smul.addr %s119, 16
          %s121 = scalar_lea.vmem [#allocation2], %s120
          %123 = vsyncadd %s118, 0
          %s124 = smul.addr %s17, 2
          %s125 = smul.addr %s124, 8
          %s126 = scalar_lea.hbm %s0, %s125
          %s128 = sshll.u32 %s126, 4
          %s129 = int_to_ptr.hbm [resolvable:$true] %s128
          %s130 = sshll.u32 %s121, 4
          %s131 = int_to_ptr.vmem [resolvable:$true] %s130
          %133 = dma.hbm_to_vmem [thread:$0]  %s129, 256, %s131, %s118
        $region20: #{tpu_custom_call.1} parent=15 // pred_fallthru
          _
        // Predicated region
        $region21: #{tpu_custom_call.1} parent=15 // pred_check
          %p134 = pneg %p63
        $region22: #{tpu_custom_call.1} parent=15 // pred_check_branch
          %136 = sbr.rel (%p134) target = $region24
        $region23: #{tpu_custom_call.1} parent=15 // pred_region
          %s137 = sand.u32 %s53, 1
          %s138 = scalar_lea.sflag [#allocation6], %s137
          %s139 = sand.u32 %s53, 1
          %s140 = smul.addr %s139, 8
          %s141 = scalar_lea.vmem [#allocation5], %s140
          %s142 = smul.u32 8, %s17
          %144 = vsyncadd %s138, 0
          %s145 = scalar_lea.hbm %s1, %s142
          %s146 = sshll.u32 %s145, 4
          %s147 = int_to_ptr.hbm [resolvable:$true] %s146
          %s148 = sshll.u32 %s141, 4
          %s149 = int_to_ptr.vmem [resolvable:$true] %s148
          %154 = dma.hbm_to_vmem [thread:$0]  %s147, 128, %s149, %s138, 16, 16, 1
        $region24: #{tpu_custom_call.1} parent=15 // pred_fallthru
          _
      $region16: #{tpu_custom_call.1} parent=5 // pred_fallthru
        _
      %p155 = scmp.le.s32.totalorder 1, %s17
      %p156 = scmp.lt.s32.totalorder %s17, 3
      %p157 = pnand %p155, %p156
      %p158 = pneg %p157
      // Predicated region
      $region25: #{tpu_custom_call.1} parent=5 // pred_check
        _
      $region26: #{tpu_custom_call.1} parent=5 // pred_check_branch
        %160 = sbr.rel (%p157) target = $region28
      $region27: #{tpu_custom_call.1} parent=5 // pred_region
        %s161 = ssub.s32 %s17, 1
        %s162 = sand.u32 %s30, 1
        %s163 = scalar_lea.sflag [#allocation3], %s162
        %s164 = sand.u32 %s30, 1
        %s165 = smul.addr %s164, 16
        %s166 = scalar_lea.vmem [#allocation2], %s165
        // Predicated region
        $region29: #{tpu_custom_call.1} parent=27 // pred_check
          %p167 = pneg %p43
        $region30: #{tpu_custom_call.1} parent=27 // pred_check_branch
          %169 = sbr.rel (%p167) target = $region32
        $region31: #{tpu_custom_call.1} parent=27 // pred_region
          %171 = dma.done %s163, 256
        $region32: #{tpu_custom_call.1} parent=27 // pred_fallthru
          _
        %s172 = sand.u32 %s56, 1
        %s173 = scalar_lea.sflag [#allocation6], %s172
        %s174 = sand.u32 %s56, 1
        %s175 = smul.addr %s174, 8
        %s176 = scalar_lea.vmem [#allocation5], %s175
        // Predicated region
        $region33: #{tpu_custom_call.1} parent=27 // pred_check
          %p177 = pneg %p69
        $region34: #{tpu_custom_call.1} parent=27 // pred_check_branch
          %179 = sbr.rel (%p177) target = $region36
        $region35: #{tpu_custom_call.1} parent=27 // pred_region
          %181 = dma.done %s173, 128
        $region36: #{tpu_custom_call.1} parent=27 // pred_fallthru
          _
        %s182 = sand.u32 %s30, 1
        %s183 = scalar_lea.sflag [#allocation3], %s182
        %s184 = sand.u32 %s30, 1
        %s185 = smul.addr %s184, 16
        %s186 = scalar_lea.vmem [#allocation2], %s185
        %p187 = pneg %p43
        %p188 = pneg %p40
        %s189 = sand.u32 %s56, 1
        %s190 = scalar_lea.sflag [#allocation6], %s189
        %s191 = sand.u32 %s56, 1
        %s192 = smul.addr %s191, 8
        %s193 = scalar_lea.vmem [#allocation5], %s192
        %p194 = pneg %p69
        %p195 = pneg %p66
        %p196 = pneg %p95
        %p197 = pneg %p92
        %s198 = sand.u32 %s82, 1
        %s199 = scalar_lea.sflag [#allocation4], %s198
        %s200 = sand.u32 %s82, 1
        %s201 = smul.addr %s200, 16
        %s202 = scalar_lea.vmem [#allocation7], %s201
        %s203 = smul.u32 8, %s22
        %v204 = vld [vmem:[%s176] sm:$0x1]
        %v205 = vld [vmem:[%s176 + $0x1] sm:$0x1]
        %v206 = vld [vmem:[%s176 + $0x2] sm:$0x1]
        %v207 = vld [vmem:[%s176 + $0x3] sm:$0x1]
        %v208 = vld [vmem:[%s176 + $0x4] sm:$0x1]
        %v209 = vld [vmem:[%s176 + $0x5] sm:$0x1]
        %v210 = vld [vmem:[%s176 + $0x6] sm:$0x1]
        %v211 = vld [vmem:[%s176 + $0x7] sm:$0x1]
        %220 = vst [vmem:[#allocation1] ss:$9 sm:$0xff] %v204
        %s221 = scalar_lea.vmem [#allocation1], 1
        %222 = vst [vmem:[%s221] ss:$9 sm:$0xff] %v205
        %s223 = scalar_lea.vmem [#allocation1], 2
        %224 = vst [vmem:[%s223] ss:$9 sm:$0xff] %v206
        %s225 = scalar_lea.vmem [#allocation1], 3
        %226 = vst [vmem:[%s225] ss:$9 sm:$0xff] %v207
        %s227 = scalar_lea.vmem [#allocation1], 4
        %228 = vst [vmem:[%s227] ss:$9 sm:$0xff] %v208
        %s229 = scalar_lea.vmem [#allocation1], 5
        %230 = vst [vmem:[%s229] ss:$9 sm:$0xff] %v209
        %s231 = scalar_lea.vmem [#allocation1], 6
        %232 = vst [vmem:[%s231] ss:$9 sm:$0xff] %v210
        %s233 = scalar_lea.vmem [#allocation1], 7
        %234 = vst [vmem:[%s233] ss:$9 sm:$0xff] %v211
        %v235 = vld [vmem:[#allocation1] sm:$0xff]
        %237 = vst [vmem:[#allocation1] ss:$9 sm:$0xff] %v204
        %s238 = scalar_lea.vmem [#allocation1], 1
        %239 = vst [vmem:[%s238] ss:$9 sm:$0xff] %v205
        %s240 = scalar_lea.vmem [#allocation1], 2
        %241 = vst [vmem:[%s240] ss:$9 sm:$0xff] %v206
        %s242 = scalar_lea.vmem [#allocation1], 3
        %243 = vst [vmem:[%s242] ss:$9 sm:$0xff] %v207
        %s244 = scalar_lea.vmem [#allocation1], 4
        %245 = vst [vmem:[%s244] ss:$9 sm:$0xff] %v208
        %s246 = scalar_lea.vmem [#allocation1], 5
        %247 = vst [vmem:[%s246] ss:$9 sm:$0xff] %v209
        %s248 = scalar_lea.vmem [#allocation1], 6
        %249 = vst [vmem:[%s248] ss:$9 sm:$0xff] %v210
        %s250 = scalar_lea.vmem [#allocation1], 7
        %251 = vst [vmem:[%s250] ss:$9 sm:$0xff] %v211
        %v252 = vld [vmem:[#allocation1] sm:$0xff]
        %v254 = vld [vmem:[%s166] sm:$0xff]
        %v255 = vld [vmem:[%s166 + $0x8] sm:$0xff]
        %v256 = vadd.f32 %v254, %v235
        %v257 = vadd.f32 %v255, %v252
        %258 = vst [vmem:[%s202] sm:$0xff] %v256
        %259 = vst [vmem:[%s202 + $0x8] sm:$0xff] %v257
        %s260 = sand.u32 %s82, 1
        %s261 = scalar_lea.sflag [#allocation4], %s260
        %s262 = sand.u32 %s82, 1
        %s263 = smul.addr %s262, 16
        %s264 = scalar_lea.vmem [#allocation7], %s263
        // Predicated region
        $region37: #{tpu_custom_call.1} parent=27 // pred_check
          %p265 = pneg %p92
        $region38: #{tpu_custom_call.1} parent=27 // pred_check_branch
          %267 = sbr.rel (%p265) target = $region40
        $region39: #{tpu_custom_call.1} parent=27 // pred_region
          %269 = vsyncadd %s261, 0
          %s270 = smul.addr %s22, 2
          %s271 = smul.addr %s270, 8
          %s272 = scalar_lea.hbm %s2, %s271
          %s274 = sshll.u32 %s264, 4
          %s275 = int_to_ptr.vmem [resolvable:$true] %s274
          %s276 = sshll.u32 %s272, 4
          %s277 = int_to_ptr.hbm [resolvable:$true] %s276
          %279 = dma.vmem_to_hbm [thread:$0]  %s275, 256, %s277, %s261
        $region40: #{tpu_custom_call.1} parent=27 // pred_fallthru
          _
      $region28: #{tpu_custom_call.1} parent=5 // pred_fallthru
        _
      %p280 = scmp.le.s32.totalorder 2, %s17
      // Predicated region
      $region41: #{tpu_custom_call.1} parent=5 // pred_check
        %p281 = pneg %p280
      $region42: #{tpu_custom_call.1} parent=5 // pred_check_branch
        %283 = sbr.rel (%p281) target = $region44
      $region43: #{tpu_custom_call.1} parent=5 // pred_region
        %s284 = ssub.s32 %s17, 2
        // Predicated region
        $region45: #{tpu_custom_call.1} parent=43 // pred_check
          %p285 = pneg %p98
        $region46: #{tpu_custom_call.1} parent=43 // pred_check_branch
          %287 = sbr.rel (%p285) target = $region48
        $region47: #{tpu_custom_call.1} parent=43 // pred_region
          %s288 = sand.u32 %s83, 1
          %s289 = scalar_lea.sflag [#allocation4], %s288
          %s290 = sand.u32 %s83, 1
          %s291 = smul.addr %s290, 16
          %s292 = scalar_lea.vmem [#allocation7], %s291
          %294 = dma.done %s289, 256
        $region48: #{tpu_custom_call.1} parent=43 // pred_fallthru
          _
      $region44: #{tpu_custom_call.1} parent=5 // pred_fallthru
        _
    $region6: #{tpu_custom_call.1} parent=1 // loop_footer
      %s21 = sadd.s32 1, %s17
    $region7: #{tpu_custom_call.1} parent=1 // loop_footer_branch
      %16 = sbr.rel target = $region3
    $region8: #{tpu_custom_call.1} parent=1 // loop_exit
      _
    %295 = vsyncpa [#allocation3], 1
    %s296 = scalar_lea.sflag [#allocation3], 1
    %297 = vsyncpa %s296, 1
    %298 = vsyncpa [#allocation6], 1
    %s299 = scalar_lea.sflag [#allocation6], 1
    %300 = vsyncpa %s299, 1
    %301 = vsyncpa [#allocation4], 1
    %s302 = scalar_lea.sflag [#allocation4], 1
    %303 = vsyncpa %s302, 1

</llo_original>
